<compile_context>
chip_gen: v6e
topology: v6e:2x2x1
jax: 0.10.0
libtpu: 0.0.40
codegen_flags: <defaults>
</compile_context>

<pallas_src>
import functools
import math

import jax
import jax.numpy as jnp
from jax.experimental import pallas as pl
from jax.experimental.pallas import tpu as pltpu

_LANE = 128
# Large-but-finite negative fill: exp(fill - m) underflows to 0 and
# fill - fill == 0, so filled / masked elements contribute exactly nothing.
_FILL = -1e30


def _kl_stats_kernel(p_ref, q_ref, o_ref, *, rows, tc, chunks_per_split,
                     needs_mask):
    """Streams (B, tc, 128) chunks of the logits, keeping per-lane online
    softmax partials for this split in its output block:
      o[.,0] = running max of p        o[.,1] = running max of q
      o[.,2] = running sum exp(p - m)  o[.,3] = running sum exp(q - m)
      o[.,4] = running sum exp(p - m) * (p - q)
    """
    h = pl.program_id(0)            # split index (parallel across TCs on v7x)
    c = pl.program_id(1)            # chunk index inside split (reduction axis)
    stat_shape = o_ref.shape[2:]    # (B, 128)

    @pl.when(c == 0)
    def _init():
        o_ref[0, 0] = jnp.full(stat_shape, -jnp.inf, jnp.float32)
        o_ref[0, 1] = jnp.full(stat_shape, -jnp.inf, jnp.float32)
        o_ref[0, 2] = jnp.zeros(stat_shape, jnp.float32)
        o_ref[0, 3] = jnp.zeros(stat_shape, jnp.float32)
        o_ref[0, 4] = jnp.zeros(stat_shape, jnp.float32)

    p = p_ref[...].astype(jnp.float32)          # (B, tc, 128)
    q = q_ref[...].astype(jnp.float32)

    if needs_mask:
        # Rows at/after `rows` belong to the ragged tail or a phantom chunk
        # (undefined data) -- neutralize them before any arithmetic.
        row0 = (h * chunks_per_split + c) * tc
        ridx = row0 + jax.lax.broadcasted_iota(jnp.int32, p.shape, 1)
        valid = ridx < rows
        p = jnp.where(valid, p, _FILL)
        q = jnp.where(valid, q, _FILL)

    m_p_old = o_ref[0, 0]
    m_q_old = o_ref[0, 1]

    # Per-lane chunk maxima: sublane (axis=1) reductions only; the 128 lane
    # streams are merged once in the wrapper -- no per-chunk cross-lane work.
    m_p = jnp.maximum(m_p_old, jnp.max(p, axis=1))        # (B, 128)
    m_q = jnp.maximum(m_q_old, jnp.max(q, axis=1))
    alpha_p = jnp.exp(m_p_old - m_p)                       # rescale old sums
    alpha_q = jnp.exp(m_q_old - m_q)

    # One exp per element per input, reused for both the softmax normalizer
    # and the weighted (p - q) sum.
    e_p = jnp.exp(p - m_p[:, None, :])
    e_q = jnp.exp(q - m_q[:, None, :])
    w = e_p * (p - q)

    o_ref[0, 0] = m_p
    o_ref[0, 1] = m_q
    o_ref[0, 2] = alpha_p * o_ref[0, 2] + jnp.sum(e_p, axis=1)
    o_ref[0, 3] = alpha_q * o_ref[0, 3] + jnp.sum(e_q, axis=1)
    o_ref[0, 4] = alpha_p * o_ref[0, 4] + jnp.sum(w, axis=1)


def kl_div_loss(p, q, *, target_block_bytes=2 << 20, num_splits=2):
    """Pallas implementation of KLDivLoss.forward(p, q). Returns a scalar f32."""
    assert p.shape == q.shape, "p and q must have identical shapes"
    b = p.shape[0]
    n = math.prod(p.shape[1:])

    dtype = p.dtype
    if not jnp.issubdtype(dtype, jnp.floating):
        dtype = jnp.float32
    p2 = p.reshape(b, n).astype(dtype)
    q2 = q.reshape(b, n).astype(dtype)

    itemsize = jnp.dtype(dtype).itemsize
    sub = 8 * max(1, 4 // itemsize)     # sublane granularity: f32 -> 8, bf16 -> 16

    # Each batch row is viewed as (r, 128) lanes.  Only a final partial row
    # (< 128 elements) is ever padded; 128-aligned inputs get NO wrapper copy.
    r = pl.cdiv(n, _LANE)
    lane_pad = r * _LANE - n
    if lane_pad:
        fill = jnp.asarray(_FILL, dtype)          # identical fill in p and q
        p2 = jnp.pad(p2, ((0, 0), (0, lane_pad)), constant_values=fill)
        q2 = jnp.pad(q2, ((0, 0), (0, lane_pad)), constant_values=fill)
    p3 = p2.reshape(b, r, _LANE)
    q3 = q2.reshape(b, r, _LANE)

    # Rows per grid step: ~target_block_bytes per input block so that
    # 2 inputs x 2 pipeline buffers + f32 temporaries stay well inside the
    # 48 MiB budget below on every generation (v7x has 64 MiB VMEM per core).
    tc_cap = max(sub, (target_block_bytes // (b * _LANE * itemsize)) // sub * sub)
    tc = r if r <= tc_cap else tc_cap
    num_chunks = pl.cdiv(r, tc)

    # Leading 'parallel' axis: splits the chunk range across TensorCores on
    # v7x (2 cores/chip); runs sequentially (essentially free) on v5e/v6e.
    splits = max(1, min(num_splits, num_chunks))
    cpl = pl.cdiv(num_chunks, splits)             # chunks per split
    # Ragged / phantom chunks exist whenever splits*cpl*tc overshoots r.
    needs_mask = splits * cpl * tc > r
    last_block = num_chunks - 1

    def in_map(h, c):
        # Clamp phantom chunk indices onto a real block (no OOB DMA); their
        # contents are masked out inside the kernel.
        return (0, jnp.minimum(h * cpl + c, last_block), 0)

    kernel = functools.partial(_kl_stats_kernel, rows=r, tc=tc,
                               chunks_per_split=cpl, needs_mask=needs_mask)

    stats = pl.pallas_call(
        kernel,
        out_shape=jax.ShapeDtypeStruct((splits, 5, b, _LANE), jnp.float32),
        grid_spec=pltpu.PrefetchScalarGridSpec(
            num_scalar_prefetch=0,
            grid=(splits, cpl),
            in_specs=[
                pl.BlockSpec((b, tc, _LANE), in_map),
                pl.BlockSpec((b, tc, _LANE), in_map),
            ],
            out_specs=pl.BlockSpec((1, 5, b, _LANE), lambda h, c: (h, 0, 0, 0)),
        ),
        compiler_params=pltpu.CompilerParams(
            dimension_semantics=("parallel", "arbitrary"),
            vmem_limit_bytes=48 * 1024 * 1024,
        ),
    )(p3, q3)

    # Merge the per-split, per-lane online-softmax partials (tiny:
    # splits*5*b*128 floats) and apply 'batchmean'.
    m_p, m_q = stats[:, 0], stats[:, 1]           # (splits, b, 128)
    s_p, s_q, acc = stats[:, 2], stats[:, 3], stats[:, 4]
    gmax_p = jnp.max(m_p, axis=(0, 2))            # (b,)
    gmax_q = jnp.max(m_q, axis=(0, 2))
    scale_p = jnp.exp(m_p - gmax_p[None, :, None])
    scale_q = jnp.exp(m_q - gmax_q[None, :, None])
    sum_p = jnp.sum(s_p * scale_p, axis=(0, 2))
    sum_q = jnp.sum(s_q * scale_q, axis=(0, 2))
    num = jnp.sum(acc * scale_p, axis=(0, 2))
    lse_p = gmax_p + jnp.log(sum_p)
    lse_q = gmax_q + jnp.log(sum_q)
    kl_rows = num / sum_p - lse_p + lse_q         # per-batch-row KL(p || q)
    return jnp.sum(kl_rows) / b


def _reference_kl(p, q):
    """Pure-JAX reference of the PyTorch forward, for a sanity check."""
    b = p.shape[0]
    pp = jax.nn.softmax(p.reshape(b, -1).astype(jnp.float32), axis=-1)
    qq = jax.nn.softmax(q.reshape(b, -1).astype(jnp.float32), axis=-1)
    return jnp.sum(pp * (jnp.log(pp) - jnp.log(qq))) / b


if __name__ == "__main__":
    k0, k1, k2, k3 = jax.random.split(jax.random.PRNGKey(0), 4)

    # Primary case: NCHW logits, 128-aligned flattened size -> no wrapper pad.
    p = jax.random.normal(k0, (2, 4, 16, 16), dtype=jnp.float32)
    q = jax.random.normal(k1, (2, 4, 16, 16), dtype=jnp.float32)
    loss = jax.block_until_ready(kl_div_loss(p, q))
    ref = _reference_kl(p, q)
    assert jnp.isfinite(loss), "kernel produced non-finite loss"
    assert jnp.allclose(loss, ref, rtol=1e-4, atol=1e-5), (loss, ref)

    # Ragged case: n = 1600 (not 128-aligned), tiny blocks to force multiple
    # chunks, the 2-way split and the in-kernel tail masking.
    pr = jax.random.normal(k2, (2, 4, 20, 20), dtype=jnp.float32)
    qr = jax.random.normal(k3, (2, 4, 20, 20), dtype=jnp.float32)
    loss_r = jax.block_until_ready(kl_div_loss(pr, qr, target_block_bytes=8 * 1024))
    ref_r = _reference_kl(pr, qr)
    assert jnp.isfinite(loss_r), "kernel produced non-finite loss (ragged)"
    assert jnp.allclose(loss_r, ref_r, rtol=1e-4, atol=1e-5), (loss_r, ref_r)

    print("KERNEL_OK")
</pallas_src>

<mosaic_0001>
module attributes {stable_mosaic.version = 11 : i64} {
  func.func @_kl_stats_kernel(%arg0: i32, %arg1: i32, %arg2: memref<2x8x128xf32, #tpu.memory_space<vmem>>, %arg3: memref<2x8x128xf32, #tpu.memory_space<vmem>>, %arg4: memref<1x5x2x128xf32, #tpu.memory_space<vmem>>) attributes {dimension_semantics = [#tpu.dimension_semantics<parallel>, #tpu.dimension_semantics<arbitrary>], iteration_bounds = array<i64: 1, 1>, scalar_prefetch = 0 : i64, scratch_operands = 0 : i64, tpu.core_type = #tpu.core_type<tc>, window_params = [{transform_indices = @transform_0, window_bounds = array<i64: 2, 8, 128>}, {transform_indices = @transform_1, window_bounds = array<i64: 2, 8, 128>}, {transform_indices = @transform_2, window_bounds = array<i64: 1, 5, 2, 128>}]} {
    %c0_i32 = arith.constant 0 : i32
    %0 = arith.cmpi eq, %arg1, %c0_i32 : i32
    %1 = arith.extui %0 : i1 to i32
    %c0_i32_0 = arith.constant 0 : i32
    %2 = arith.cmpi ne, %1, %c0_i32_0 : i32
    scf.if %2 {
      %cst_46 = arith.constant 0xFF800000 : f32
      %57 = vector.broadcast %cst_46 : f32 to vector<2x128xf32>
      %c0_47 = arith.constant 0 : index
      %c0_48 = arith.constant 0 : index
      %c0_49 = arith.constant 0 : index
      %c0_50 = arith.constant 0 : index
      %58 = vector.load %arg4[%c0_47, %c0_48, %c0_49, %c0_50] : memref<1x5x2x128xf32, #tpu.memory_space<vmem>>, vector<1x1x2x128xf32>
      %59 = vector.shape_cast %58 : vector<1x1x2x128xf32> to vector<2x128xf32>
      %60 = vector.shape_cast %57 : vector<2x128xf32> to vector<1x1x2x128xf32>
      tpu.vector_store %arg4[%c0_47, %c0_48, %c0_49, %c0_50], %60 {strides = array<i32>} : memref<1x5x2x128xf32, #tpu.memory_space<vmem>>, vector<1x1x2x128xf32>,
      %cst_51 = arith.constant 0xFF800000 : f32
      %61 = vector.broadcast %cst_51 : f32 to vector<2x128xf32>
      %c0_52 = arith.constant 0 : index
      %c1_53 = arith.constant 1 : index
      %c0_54 = arith.constant 0 : index
      %c0_55 = arith.constant 0 : index
      %62 = vector.load %arg4[%c0_52, %c1_53, %c0_54, %c0_55] : memref<1x5x2x128xf32, #tpu.memory_space<vmem>>, vector<1x1x2x128xf32>
      %63 = vector.shape_cast %62 : vector<1x1x2x128xf32> to vector<2x128xf32>
      %64 = vector.shape_cast %61 : vector<2x128xf32> to vector<1x1x2x128xf32>
      tpu.vector_store %arg4[%c0_52, %c1_53, %c0_54, %c0_55], %64 {strides = array<i32>} : memref<1x5x2x128xf32, #tpu.memory_space<vmem>>, vector<1x1x2x128xf32>,
      %cst_56 = arith.constant 0.000000e+00 : f32
      %65 = vector.broadcast %cst_56 : f32 to vector<2x128xf32>
      %c0_57 = arith.constant 0 : index
      %c2_58 = arith.constant 2 : index
      %c0_59 = arith.constant 0 : index
      %c0_60 = arith.constant 0 : index
      %66 = vector.load %arg4[%c0_57, %c2_58, %c0_59, %c0_60] : memref<1x5x2x128xf32, #tpu.memory_space<vmem>>, vector<1x1x2x128xf32>
      %67 = vector.shape_cast %66 : vector<1x1x2x128xf32> to vector<2x128xf32>
      %68 = vector.shape_cast %65 : vector<2x128xf32> to vector<1x1x2x128xf32>
      tpu.vector_store %arg4[%c0_57, %c2_58, %c0_59, %c0_60], %68 {strides = array<i32>} : memref<1x5x2x128xf32, #tpu.memory_space<vmem>>, vector<1x1x2x128xf32>,
      %cst_61 = arith.constant 0.000000e+00 : f32
      %69 = vector.broadcast %cst_61 : f32 to vector<2x128xf32>
      %c0_62 = arith.constant 0 : index
      %c3_63 = arith.constant 3 : index
      %c0_64 = arith.constant 0 : index
      %c0_65 = arith.constant 0 : index
      %70 = vector.load %arg4[%c0_62, %c3_63, %c0_64, %c0_65] : memref<1x5x2x128xf32, #tpu.memory_space<vmem>>, vector<1x1x2x128xf32>
      %71 = vector.shape_cast %70 : vector<1x1x2x128xf32> to vector<2x128xf32>
      %72 = vector.shape_cast %69 : vector<2x128xf32> to vector<1x1x2x128xf32>
      tpu.vector_store %arg4[%c0_62, %c3_63, %c0_64, %c0_65], %72 {strides = array<i32>} : memref<1x5x2x128xf32, #tpu.memory_space<vmem>>, vector<1x1x2x128xf32>,
      %cst_66 = arith.constant 0.000000e+00 : f32
      %73 = vector.broadcast %cst_66 : f32 to vector<2x128xf32>
      %c0_67 = arith.constant 0 : index
      %c4_68 = arith.constant 4 : index
      %c0_69 = arith.constant 0 : index
      %c0_70 = arith.constant 0 : index
      %74 = vector.load %arg4[%c0_67, %c4_68, %c0_69, %c0_70] : memref<1x5x2x128xf32, #tpu.memory_space<vmem>>, vector<1x1x2x128xf32>
      %75 = vector.shape_cast %74 : vector<1x1x2x128xf32> to vector<2x128xf32>
      %76 = vector.shape_cast %73 : vector<2x128xf32> to vector<1x1x2x128xf32>
      tpu.vector_store %arg4[%c0_67, %c4_68, %c0_69, %c0_70], %76 {strides = array<i32>} : memref<1x5x2x128xf32, #tpu.memory_space<vmem>>, vector<1x1x2x128xf32>,
    } else {
    }
    %c0 = arith.constant 0 : index
    %c0_1 = arith.constant 0 : index
    %c0_2 = arith.constant 0 : index
    %3 = vector.load %arg2[%c0, %c0_1, %c0_2] : memref<2x8x128xf32, #tpu.memory_space<vmem>>, vector<2x8x128xf32>
    %c0_3 = arith.constant 0 : index
    %c0_4 = arith.constant 0 : index
    %c0_5 = arith.constant 0 : index
    %4 = vector.load %arg3[%c0_3, %c0_4, %c0_5] : memref<2x8x128xf32, #tpu.memory_space<vmem>>, vector<2x8x128xf32>
    %c0_6 = arith.constant 0 : index
    %c0_7 = arith.constant 0 : index
    %c0_8 = arith.constant 0 : index
    %c0_9 = arith.constant 0 : index
    %5 = vector.load %arg4[%c0_6, %c0_7, %c0_8, %c0_9] : memref<1x5x2x128xf32, #tpu.memory_space<vmem>>, vector<1x1x2x128xf32>
    %6 = vector.shape_cast %5 : vector<1x1x2x128xf32> to vector<2x128xf32>
    %c0_10 = arith.constant 0 : index
    %c1 = arith.constant 1 : index
    %c0_11 = arith.constant 0 : index
    %c0_12 = arith.constant 0 : index
    %7 = vector.load %arg4[%c0_10, %c1, %c0_11, %c0_12] : memref<1x5x2x128xf32, #tpu.memory_space<vmem>>, vector<1x1x2x128xf32>
    %8 = vector.shape_cast %7 : vector<1x1x2x128xf32> to vector<2x128xf32>
    %cst = arith.constant dense<0xFF800000> : vector<2x128xf32>
    %9 = vector.multi_reduction <maximumf>, %3, %cst [1] : vector<2x8x128xf32> to vector<2x128xf32>
    %10 = arith.maximumf %6, %9 : vector<2x128xf32>
    %cst_13 = arith.constant dense<0xFF800000> : vector<2x128xf32>
    %11 = vector.multi_reduction <maximumf>, %4, %cst_13 [1] : vector<2x8x128xf32> to vector<2x128xf32>
    %12 = arith.maximumf %8, %11 : vector<2x128xf32>
    %13 = arith.subf %6, %10 : vector<2x128xf32>
    %14 = math.exp %13 : vector<2x128xf32>
    %15 = arith.subf %8, %12 : vector<2x128xf32>
    %16 = math.exp %15 : vector<2x128xf32>
    %17 = vector.shape_cast %10 : vector<2x128xf32> to vector<2x1x128xf32>
    %18 = vector.broadcast %17 : vector<2x1x128xf32> to vector<2x8x128xf32>
    %19 = arith.subf %3, %18 : vector<2x8x128xf32>
    %20 = math.exp %19 : vector<2x8x128xf32>
    %21 = vector.shape_cast %12 : vector<2x128xf32> to vector<2x1x128xf32>
    %22 = vector.broadcast %21 : vector<2x1x128xf32> to vector<2x8x128xf32>
    %23 = arith.subf %4, %22 : vector<2x8x128xf32>
    %24 = math.exp %23 : vector<2x8x128xf32>
    %25 = arith.subf %3, %4 : vector<2x8x128xf32>
    %26 = arith.mulf %20, %25 : vector<2x8x128xf32>
    %c0_14 = arith.constant 0 : index
    %c0_15 = arith.constant 0 : index
    %c0_16 = arith.constant 0 : index
    %c0_17 = arith.constant 0 : index
    %27 = vector.load %arg4[%c0_14, %c0_15, %c0_16, %c0_17] : memref<1x5x2x128xf32, #tpu.memory_space<vmem>>, vector<1x1x2x128xf32>
    %28 = vector.shape_cast %27 : vector<1x1x2x128xf32> to vector<2x128xf32>
    %29 = vector.shape_cast %10 : vector<2x128xf32> to vector<1x1x2x128xf32>
    tpu.vector_store %arg4[%c0_14, %c0_15, %c0_16, %c0_17], %29 {strides = array<i32>} : memref<1x5x2x128xf32, #tpu.memory_space<vmem>>, vector<1x1x2x128xf32>,
    %c0_18 = arith.constant 0 : index
    %c1_19 = arith.constant 1 : index
    %c0_20 = arith.constant 0 : index
    %c0_21 = arith.constant 0 : index
    %30 = vector.load %arg4[%c0_18, %c1_19, %c0_20, %c0_21] : memref<1x5x2x128xf32, #tpu.memory_space<vmem>>, vector<1x1x2x128xf32>
    %31 = vector.shape_cast %30 : vector<1x1x2x128xf32> to vector<2x128xf32>
    %32 = vector.shape_cast %12 : vector<2x128xf32> to vector<1x1x2x128xf32>
    tpu.vector_store %arg4[%c0_18, %c1_19, %c0_20, %c0_21], %32 {strides = array<i32>} : memref<1x5x2x128xf32, #tpu.memory_space<vmem>>, vector<1x1x2x128xf32>,
    %c0_22 = arith.constant 0 : index
    %c2 = arith.constant 2 : index
    %c0_23 = arith.constant 0 : index
    %c0_24 = arith.constant 0 : index
    %33 = vector.load %arg4[%c0_22, %c2, %c0_23, %c0_24] : memref<1x5x2x128xf32, #tpu.memory_space<vmem>>, vector<1x1x2x128xf32>
    %34 = vector.shape_cast %33 : vector<1x1x2x128xf32> to vector<2x128xf32>
    %35 = arith.mulf %14, %34 : vector<2x128xf32>
    %cst_25 = arith.constant dense<0.000000e+00> : vector<2x128xf32>
    %36 = vector.multi_reduction <add>, %20, %cst_25 [1] : vector<2x8x128xf32> to vector<2x128xf32>
    %37 = arith.addf %35, %36 : vector<2x128xf32>
    %c0_26 = arith.constant 0 : index
    %c2_27 = arith.constant 2 : index
    %c0_28 = arith.constant 0 : index
    %c0_29 = arith.constant 0 : index
    %38 = vector.load %arg4[%c0_26, %c2_27, %c0_28, %c0_29] : memref<1x5x2x128xf32, #tpu.memory_space<vmem>>, vector<1x1x2x128xf32>
    %39 = vector.shape_cast %38 : vector<1x1x2x128xf32> to vector<2x128xf32>
    %40 = vector.shape_cast %37 : vector<2x128xf32> to vector<1x1x2x128xf32>
    tpu.vector_store %arg4[%c0_26, %c2_27, %c0_28, %c0_29], %40 {strides = array<i32>} : memref<1x5x2x128xf32, #tpu.memory_space<vmem>>, vector<1x1x2x128xf32>,
    %c0_30 = arith.constant 0 : index
    %c3 = arith.constant 3 : index
    %c0_31 = arith.constant 0 : index
    %c0_32 = arith.constant 0 : index
    %41 = vector.load %arg4[%c0_30, %c3, %c0_31, %c0_32] : memref<1x5x2x128xf32, #tpu.memory_space<vmem>>, vector<1x1x2x128xf32>
    %42 = vector.shape_cast %41 : vector<1x1x2x128xf32> to vector<2x128xf32>
    %43 = arith.mulf %16, %42 : vector<2x128xf32>
    %cst_33 = arith.constant dense<0.000000e+00> : vector<2x128xf32>
    %44 = vector.multi_reduction <add>, %24, %cst_33 [1] : vector<2x8x128xf32> to vector<2x128xf32>
    %45 = arith.addf %43, %44 : vector<2x128xf32>
    %c0_34 = arith.constant 0 : index
    %c3_35 = arith.constant 3 : index
    %c0_36 = arith.constant 0 : index
    %c0_37 = arith.constant 0 : index
    %46 = vector.load %arg4[%c0_34, %c3_35, %c0_36, %c0_37] : memref<1x5x2x128xf32, #tpu.memory_space<vmem>>, vector<1x1x2x128xf32>
    %47 = vector.shape_cast %46 : vector<1x1x2x128xf32> to vector<2x128xf32>
    %48 = vector.shape_cast %45 : vector<2x128xf32> to vector<1x1x2x128xf32>
    tpu.vector_store %arg4[%c0_34, %c3_35, %c0_36, %c0_37], %48 {strides = array<i32>} : memref<1x5x2x128xf32, #tpu.memory_space<vmem>>, vector<1x1x2x128xf32>,
    %c0_38 = arith.constant 0 : index
    %c4 = arith.constant 4 : index
    %c0_39 = arith.constant 0 : index
    %c0_40 = arith.constant 0 : index
    %49 = vector.load %arg4[%c0_38, %c4, %c0_39, %c0_40] : memref<1x5x2x128xf32, #tpu.memory_space<vmem>>, vector<1x1x2x128xf32>
    %50 = vector.shape_cast %49 : vector<1x1x2x128xf32> to vector<2x128xf32>
    %51 = arith.mulf %14, %50 : vector<2x128xf32>
    %cst_41 = arith.constant dense<0.000000e+00> : vector<2x128xf32>
    %52 = vector.multi_reduction <add>, %26, %cst_41 [1] : vector<2x8x128xf32> to vector<2x128xf32>
    %53 = arith.addf %51, %52 : vector<2x128xf32>
    %c0_42 = arith.constant 0 : index
    %c4_43 = arith.constant 4 : index
    %c0_44 = arith.constant 0 : index
    %c0_45 = arith.constant 0 : index
    %54 = vector.load %arg4[%c0_42, %c4_43, %c0_44, %c0_45] : memref<1x5x2x128xf32, #tpu.memory_space<vmem>>, vector<1x1x2x128xf32>
    %55 = vector.shape_cast %54 : vector<1x1x2x128xf32> to vector<2x128xf32>
    %56 = vector.shape_cast %53 : vector<2x128xf32> to vector<1x1x2x128xf32>
    tpu.vector_store %arg4[%c0_42, %c4_43, %c0_44, %c0_45], %56 {strides = array<i32>} : memref<1x5x2x128xf32, #tpu.memory_space<vmem>>, vector<1x1x2x128xf32>,
    return
  }
  func.func @transform_0(%arg0: i32, %arg1: i32) -> (i32, i32, i32) {
    %c1_i32 = arith.constant 1 : i32
    %0 = arith.muli %arg0, %c1_i32 : i32
    %1 = arith.addi %0, %arg1 : i32
    %c0_i32 = arith.constant 0 : i32
    %2 = arith.minsi %1, %c0_i32 : i32
    %c0_i32_0 = arith.constant 0 : i32
    %c0_i32_1 = arith.constant 0 : i32
    %c0_i32_2 = arith.constant 0 : i32
    return %c0_i32_0, %2, %c0_i32_1 : i32, i32, i32
  }
  func.func @transform_1(%arg0: i32, %arg1: i32) -> (i32, i32, i32) {
    %c1_i32 = arith.constant 1 : i32
    %0 = arith.muli %arg0, %c1_i32 : i32
    %1 = arith.addi %0, %arg1 : i32
    %c0_i32 = arith.constant 0 : i32
    %2 = arith.minsi %1, %c0_i32 : i32
    %c0_i32_0 = arith.constant 0 : i32
    %c0_i32_1 = arith.constant 0 : i32
    %c0_i32_2 = arith.constant 0 : i32
    return %c0_i32_0, %2, %c0_i32_1 : i32, i32, i32
  }
  func.func @transform_2(%arg0: i32, %arg1: i32) -> (i32, i32, i32, i32) {
    %c0_i32 = arith.constant 0 : i32
    %c0_i32_0 = arith.constant 0 : i32
    %c0_i32_1 = arith.constant 0 : i32
    %c0_i32_2 = arith.constant 0 : i32
    return %arg0, %c0_i32, %c0_i32_0, %c0_i32_1 : i32, i32, i32, i32
  }
}

</mosaic_0001>

<llo_original>
// kernel: tpu_custom_call.1
$region0: #{tpu_custom_call.1}
  #allocation0 [shape = 'u32[]', space=smem, size = 0x4, offset = 0x4, fixed_abs, tag = 'smem constant byte address 0x4 - core index']
  #allocation1 [shape = 'u32[144,128]{1,0:T(1,128)}', space=vmem, size = 0x12000, scoped, tag = 'internal scratch']
  %s0 = inlined_call_operand.hbm [shape: f32[2,8,128], index: 0, kind: input, shape index: {}]
  %s1 = inlined_call_operand.hbm [shape: f32[2,8,128], index: 1, kind: input, shape index: {}]
  %s2 = inlined_call_operand.hbm [shape: f32[1,5,2,128], index: 2, kind: output, shape index: {}]
  %s3 = sld [smem:[#allocation0]]
  $region30: #{tpu_custom_call.1} parent=0
    _
  %s5 = ssub.s32 1, %s3
  %s6 = scalar_select 0, %s5, %s3
  $region1: #{tpu_custom_call.1} parent=0
    #allocation2 [shape = 'u8[8192]{0}', space=vmem, size = 0x2000, scoped, tag = 'input window, operand 0, single buffered']
    #allocation3 [shape = 's32[1]{0}', space=sflag, size = 0x4, scoped, tag = 'scoped memory for tpu_custom_call.1']
    #allocation4 [shape = 's32[1]{0}', space=sflag, size = 0x4, scoped, tag = 'scoped memory for tpu_custom_call.1']
    #allocation5 [shape = 'u8[8192]{0}', space=vmem, size = 0x2000, scoped, tag = 'input window, operand 1, single buffered']
    #allocation6 [shape = 's32[1]{0}', space=sflag, size = 0x4, scoped, tag = 'scoped memory for tpu_custom_call.1']
    #allocation7 [shape = 'u8[5120]{0}', space=vmem, size = 0x1400, scoped, tag = 'output window, operand 0, single buffered']
    %7 = vsyncpa [#allocation3], 0
    %8 = vsyncpa [#allocation6], 0
    %9 = vsyncpa [#allocation4], 0
    // Predicated region
    $region2: #{tpu_custom_call.1} parent=1 // pred_check
      _
    $region3: #{tpu_custom_call.1} parent=1 // pred_check_branch
      %11 = sbr.rel (0) target = $region5
    $region4: #{tpu_custom_call.1} parent=1 // pred_region
      %s12 = sadd.s32 0, 0
      %p13 = scmp.lt.s32.totalorder %s12, 0
      %s14 = scalar_select %p13, %s12, 0
      %s16 = ssub.s32 256, 256
      %17 = vsyncadd [#allocation3], %s16
      %s18 = smul.addr %s14, 128
      %s19 = scalar_lea.hbm %s0, %s18
      %s20 = sshll.u32 [#allocation2], 4
      %s21 = int_to_ptr.vmem [resolvable:$true] %s20
      %26 = dma.hbm_to_vmem [thread:$0]  %s19, 256, %s21, [#allocation3], 128, 128, 8
    $region5: #{tpu_custom_call.1} parent=1 // pred_fallthru
      _
    // Predicated region
    $region6: #{tpu_custom_call.1} parent=1 // pred_check
      _
    $region7: #{tpu_custom_call.1} parent=1 // pred_check_branch
      %28 = sbr.rel (0) target = $region9
    $region8: #{tpu_custom_call.1} parent=1 // pred_region
      %s29 = sadd.s32 0, 0
      %p30 = scmp.lt.s32.totalorder %s29, 0
      %s31 = scalar_select %p30, %s29, 0
      %s33 = ssub.s32 256, 256
      %34 = vsyncadd [#allocation6], %s33
      %s35 = smul.addr %s31, 128
      %s36 = scalar_lea.hbm %s1, %s35
      %s37 = sshll.u32 [#allocation5], 4
      %s38 = int_to_ptr.vmem [resolvable:$true] %s37
      %43 = dma.hbm_to_vmem [thread:$0]  %s36, 256, %s38, [#allocation6], 128, 128, 8
    $region9: #{tpu_custom_call.1} parent=1 // pred_fallthru
      _
    // Predicated region
    $region10: #{tpu_custom_call.1} parent=1 // pred_check
      _
    $region11: #{tpu_custom_call.1} parent=1 // pred_check_branch
      %45 = sbr.rel (0) target = $region13
    $region12: #{tpu_custom_call.1} parent=1 // pred_region
      %46 = dma.done [#allocation3], 256
    $region13: #{tpu_custom_call.1} parent=1 // pred_fallthru
      _
    // Predicated region
    $region14: #{tpu_custom_call.1} parent=1 // pred_check
      _
    $region15: #{tpu_custom_call.1} parent=1 // pred_check_branch
      %48 = sbr.rel (0) target = $region17
    $region16: #{tpu_custom_call.1} parent=1 // pred_region
      %49 = dma.done [#allocation6], 256
    $region17: #{tpu_custom_call.1} parent=1 // pred_fallthru
      _
    %s50 = sadd.s32 0, 0
    %p51 = scmp.lt.s32.totalorder %s50, 0
    %s52 = scalar_select %p51, %s50, 0
    %s53 = sadd.s32 0, 0
    %p54 = scmp.lt.s32.totalorder %s53, 0
    %s55 = scalar_select %p54, %s53, 0
    %p56 = scmp.eq.s32.totalorder 0, 0
    // Predicated region
    $region18: #{tpu_custom_call.1} parent=1 // pred_check
      %p57 = pneg %p56
    $region19: #{tpu_custom_call.1} parent=1 // pred_check_branch
      %59 = sbr.rel (%p57) target = $region21
    $region20: #{tpu_custom_call.1} parent=1 // pred_region
      %60 = vst [vmem:[#allocation7] sm:$0x3] -inf
      %s61 = scalar_lea.vmem [#allocation7], 2
      %62 = vst [vmem:[%s61] sm:$0x3] -inf
      %s63 = scalar_lea.vmem [#allocation7], 4
      %64 = vst [vmem:[%s63] sm:$0x3] 0.0
      %s65 = scalar_lea.vmem [#allocation7], 6
      %66 = vst [vmem:[%s65] sm:$0x3] 0.0
      %s67 = scalar_lea.vmem [#allocation7], 8
      %68 = vst [vmem:[%s67] sm:$0x3] 0.0
    $region21: #{tpu_custom_call.1} parent=1 // pred_fallthru
      _
    %v69 = vld [vmem:[#allocation2] sm:$0xff]
    %v70 = vld [vmem:[#allocation2 + $0x8] sm:$0xff]
    %v71 = vld [vmem:[#allocation5] sm:$0xff]
    %v72 = vld [vmem:[#allocation5 + $0x8] sm:$0xff]
    %v73 = vld [vmem:[#allocation7] sm:$0x3]
    %s74 = scalar_lea.vmem [#allocation7], 2
    %v75 = vld [vmem:[%s74] sm:$0x3]
    %v76 = vrot.slane %v69, 4
    %v77 = vmax.f32 %v69, %v76
    %v78 = vrot.slane %v77, 2
    %v79 = vmax.f32 %v77, %v78
    %v80 = vrot.slane %v79, 1
    %v81 = vmax.f32 %v79, %v80
    %v82 = vrot.slane %v70, 4
    %v83 = vmax.f32 %v70, %v82
    %v84 = vrot.slane %v83, 2
    %v85 = vmax.f32 %v83, %v84
    %v86 = vrot.slane %v85, 1
    %v87 = vmax.f32 %v85, %v86
    %vm90 = vcmask 1041409
    %v91 = vsel %vm90, %v87, %v81
    %v93 = vmax.f32 %v73, %v91
    %v94 = vrot.slane %v71, 4
    %v95 = vmax.f32 %v71, %v94
    %v96 = vrot.slane %v95, 2
    %v97 = vmax.f32 %v95, %v96
    %v98 = vrot.slane %v97, 1
    %v99 = vmax.f32 %v97, %v98
    %v100 = vrot.slane %v72, 4
    %v101 = vmax.f32 %v72, %v100
    %v102 = vrot.slane %v101, 2
    %v103 = vmax.f32 %v101, %v102
    %v104 = vrot.slane %v103, 1
    %v105 = vmax.f32 %v103, %v104
    %v108 = vsel %vm90, %v105, %v99
    %v110 = vmax.f32 %v75, %v108
    %v111 = vsub.f32 %v73, %v93
    %v112 = vmul.f32 %v111, 1.442695
    %v113 = vpow.pop %v112
    %v114 = vsub.f32 %v75, %v110
    %v115 = vmul.f32 %v114, 1.442695
    %v116 = vpow.pop %v115
    %v119 = vunpack.c.l.s4 1966171168
    %v120 = vunpack.c.0.s8 %v119
    %v121 = vlaneseq
    %v122 = vshrl.u32 %v121, 7
    %v123 = vsub.s32 %v120, %v122
    %v124 = vrot.slane %v93, %v123
    %v125 = vcombine.high %v124, %v124
    %v127 = vunpack.c.l.s4 1966171168
    %v128 = vunpack.c.0.s8 %v127
    %v129 = vlaneseq
    %v130 = vshrl.u32 %v129, 7
    %v131 = vsub.s32 %v128, %v130
    %v132 = vrot.slane %v124, %v131
    %v134 = vunpack.c.l.s4 1966171168
    %v135 = vunpack.c.0.s8 %v134
    %v136 = vlaneseq
    %v137 = vshrl.u32 %v136, 7
    %v138 = vsub.s32 %v135, %v137
    %v139 = vrot.slane %v125, %v138
    %v140 = vlaneseq
    %v141 = vshrl.u32 %v140, 7
    %v142 = vsub.s32 0, %v141
    %v143 = vrot.slane %v132, %v142
    %v144 = vlaneseq
    %v145 = vshrl.u32 %v144, 7
    %v146 = vsub.s32 0, %v145
    %v147 = vrot.slane %v139, %v146
    %v150 = vsub.f32 %v69, %v143
    %v151 = vsub.f32 %v70, %v147
    %v152 = vmul.f32 %v150, 1.442695
    %v153 = vpow.pop %v152
    %v154 = vmul.f32 %v151, 1.442695
    %v155 = vpow.pop %v154
    %v158 = vunpack.c.l.s4 1966171168
    %v159 = vunpack.c.0.s8 %v158
    %v160 = vlaneseq
    %v161 = vshrl.u32 %v160, 7
    %v162 = vsub.s32 %v159, %v161
    %v163 = vrot.slane %v110, %v162
    %v164 = vcombine.high %v163, %v163
    %v166 = vunpack.c.l.s4 1966171168
    %v167 = vunpack.c.0.s8 %v166
    %v168 = vlaneseq
    %v169 = vshrl.u32 %v168, 7
    %v170 = vsub.s32 %v167, %v169
    %v171 = vrot.slane %v163, %v170
    %v173 = vunpack.c.l.s4 1966171168
    %v174 = vunpack.c.0.s8 %v173
    %v175 = vlaneseq
    %v176 = vshrl.u32 %v175, 7
    %v177 = vsub.s32 %v174, %v176
    %v178 = vrot.slane %v164, %v177
    %v179 = vlaneseq
    %v180 = vshrl.u32 %v179, 7
    %v181 = vsub.s32 0, %v180
    %v182 = vrot.slane %v171, %v181
    %v183 = vlaneseq
    %v184 = vshrl.u32 %v183, 7
    %v185 = vsub.s32 0, %v184
    %v186 = vrot.slane %v178, %v185
    %v189 = vsub.f32 %v71, %v182
    %v190 = vsub.f32 %v72, %v186
    %v191 = vmul.f32 %v189, 1.442695
    %v192 = vpow.pop %v191
    %v193 = vmul.f32 %v190, 1.442695
    %v194 = vpow.pop %v193
    %v195 = vsub.f32 %v69, %v71
    %v196 = vsub.f32 %v70, %v72
    %v197 = vmul.f32 %v153, %v195
    %v198 = vmul.f32 %v155, %v196
    %199 = vst [vmem:[#allocation7] sm:$0x3] %v93
    %200 = vst [vmem:[%s74] sm:$0x3] %v110
    %s201 = scalar_lea.vmem [#allocation7], 4
    %v202 = vld [vmem:[%s201] sm:$0x3]
    %v203 = vmul.f32 %v113, %v202
    %v204 = vrot.slane %v153, 4
    %v205 = vadd.f32 %v153, %v204
    %v206 = vrot.slane %v205, 2
    %v207 = vadd.f32 %v205, %v206
    %v208 = vrot.slane %v207, 1
    %v209 = vadd.f32 %v207, %v208
    %v210 = vrot.slane %v155, 4
    %v211 = vadd.f32 %v155, %v210
    %v212 = vrot.slane %v211, 2
    %v213 = vadd.f32 %v211, %v212
    %v214 = vrot.slane %v213, 1
    %v215 = vadd.f32 %v213, %v214
    %v218 = vsel %vm90, %v215, %v209
    %v220 = vadd.f32 %v203, %v218
    %221 = vst [vmem:[%s201] sm:$0x3] %v220
    %s222 = scalar_lea.vmem [#allocation7], 6
    %v223 = vld [vmem:[%s222] sm:$0x3]
    %v224 = vmul.f32 %v116, %v223
    %v225 = vrot.slane %v192, 4
    %v226 = vadd.f32 %v192, %v225
    %v227 = vrot.slane %v226, 2
    %v228 = vadd.f32 %v226, %v227
    %v229 = vrot.slane %v228, 1
    %v230 = vadd.f32 %v228, %v229
    %v231 = vrot.slane %v194, 4
    %v232 = vadd.f32 %v194, %v231
    %v233 = vrot.slane %v232, 2
    %v234 = vadd.f32 %v232, %v233
    %v235 = vrot.slane %v234, 1
    %v236 = vadd.f32 %v234, %v235
    %v239 = vsel %vm90, %v236, %v230
    %v241 = vadd.f32 %v224, %v239
    %242 = vst [vmem:[%s222] sm:$0x3] %v241
    %s243 = scalar_lea.vmem [#allocation7], 8
    %v244 = vld [vmem:[%s243] sm:$0x3]
    %v245 = vmul.f32 %v113, %v244
    %v246 = vrot.slane %v197, 4
    %v247 = vadd.f32 %v197, %v246
    %v248 = vrot.slane %v247, 2
    %v249 = vadd.f32 %v247, %v248
    %v250 = vrot.slane %v249, 1
    %v251 = vadd.f32 %v249, %v250
    %v252 = vrot.slane %v198, 4
    %v253 = vadd.f32 %v198, %v252
    %v254 = vrot.slane %v253, 2
    %v255 = vadd.f32 %v253, %v254
    %v256 = vrot.slane %v255, 1
    %v257 = vadd.f32 %v255, %v256
    %v260 = vsel %vm90, %v257, %v251
    %v262 = vadd.f32 %v245, %v260
    %263 = vst [vmem:[%s243] sm:$0x3] %v262
    // Predicated region
    $region22: #{tpu_custom_call.1} parent=1 // pred_check
      _
    $region23: #{tpu_custom_call.1} parent=1 // pred_check_branch
      %265 = sbr.rel (0) target = $region25
    $region24: #{tpu_custom_call.1} parent=1 // pred_region
      %s267 = ssub.s32 160, 160
      %268 = vsyncadd [#allocation4], %s267
      %s269 = sshll.u32 [#allocation7], 4
      %s270 = int_to_ptr.vmem [resolvable:$true] %s269
      %275 = dma.vmem_to_hbm [thread:$0]  %s270, 160, %s2, [#allocation4], 32, 32, 2
    $region25: #{tpu_custom_call.1} parent=1 // pred_fallthru
      _
    // Predicated region
    $region26: #{tpu_custom_call.1} parent=1 // pred_check
      _
    $region27: #{tpu_custom_call.1} parent=1 // pred_check_branch
      %277 = sbr.rel (0) target = $region29
    $region28: #{tpu_custom_call.1} parent=1 // pred_region
      %278 = dma.done [#allocation4], 160
    $region29: #{tpu_custom_call.1} parent=1 // pred_fallthru
      _
    %279 = vsyncpa [#allocation3], 1
    %280 = vsyncpa [#allocation6], 1
    %281 = vsyncpa [#allocation4], 1

</llo_original>
